<compile_context>
chip_gen: v7x
topology: tpu7x:2x2x1
jax: 0.10.0
libtpu: 0.0.40
codegen_flags: <defaults>
</compile_context>

<pallas_src>
import jax
import jax.numpy as jnp
from jax.experimental import pallas as pl
from jax.experimental.pallas import tpu as pltpu

IN_PAD = 8          # pad in_size=4 -> 8 (sublane-aligned K for the first matmul)
MXU_N = 128         # layer-3 matmul width kept at 128 for MXU efficiency
H1, H2 = 128, 64
COMPUTE_DTYPE = jnp.bfloat16   # MXU-friendly storage for weights/activations


def _round_up(x, m):
    return (x + m - 1) // m * m


def dqn_kernel(x_ref, w1_ref, b1_ref, w2_ref, b2_ref, w3_ref, b3_ref, o_ref):
    x = x_ref[...]                                           # (tb, IN_PAD) bf16

    # layer1 + relu (bf16 MXU matmul, f32 accumulation)
    h1 = jnp.dot(x, w1_ref[...], preferred_element_type=jnp.float32) + b1_ref[...]
    h1 = jnp.maximum(h1, 0.0)

    # layer2 + relu (+ dropout in eval mode == identity)
    h2 = jnp.dot(h1.astype(w2_ref.dtype), w2_ref[...],
                 preferred_element_type=jnp.float32) + b2_ref[...]
    h2 = jnp.maximum(h2, 0.0)

    # layer3 + relu: matmul at N=128 (padded weight cols are zero), but only
    # the narrow leading slice is stored to HBM.
    h3 = jnp.dot(h2.astype(w3_ref.dtype), w3_ref[...],
                 preferred_element_type=jnp.float32) + b3_ref[...]
    h3 = jnp.maximum(h3, 0.0)                                # (tb, MXU_N) f32

    out_w = o_ref.shape[-1]                                  # narrow store width
    o_ref[...] = h3[:, :out_w].astype(o_ref.dtype)


def prepare_params(params, in_size, out_size):
    """Pad + cast params to kernel layout.

    Weights stored as (in_features, out_features) bf16 (W.T vs PyTorch);
    biases as (1, out_features) f32 rows. w1 rows padded in_size->IN_PAD with
    zeros; w3/b3 columns padded out_size->MXU_N with zeros (MXU-wide matmul,
    narrow store handled separately).
    """
    w1 = jnp.zeros((IN_PAD, H1), COMPUTE_DTYPE).at[:in_size, :].set(
        params["w1"].astype(COMPUTE_DTYPE))
    b1 = params["b1"].astype(jnp.float32)
    w2 = params["w2"].astype(COMPUTE_DTYPE)
    b2 = params["b2"].astype(jnp.float32)
    w3 = jnp.zeros((H2, MXU_N), COMPUTE_DTYPE).at[:, :out_size].set(
        params["w3"].astype(COMPUTE_DTYPE))
    b3 = jnp.zeros((1, MXU_N), jnp.float32).at[:, :out_size].set(
        params["b3"].astype(jnp.float32))
    return w1, b1, w2, b2, w3, b3


def _choose_tile(batch, block_b):
    """Batch tile: multiple of 8 sublanes, capped at block_b, and (when the
    batch allows) small enough that the grid has >= 2 steps so both v7x
    TensorCores get work under megacore sharding."""
    b8 = _round_up(batch, 8)
    tb = min(block_b, b8)
    if b8 // tb < 2 and b8 >= 16:
        tb = _round_up((b8 + 1) // 2, 8)
    b_pad = _round_up(b8, tb)
    return tb, b_pad


def dqn_forward(x, params, *, block_b=4096):
    """x: (B, in_size) f32. params: dict of (in, out)-layout weights/biases."""
    B, in_size = x.shape
    out_size = params["w3"].shape[1]
    out_store = max(8, _round_up(out_size, 8))   # narrow HBM output slab width
    w1, b1, w2, b2, w3, b3 = prepare_params(params, in_size, out_size)

    tb, b_pad = _choose_tile(B, block_b)

    # Wrapper-side zero-pad of the input slab: (B, 4) f32 -> (b_pad, 8) bf16.
    # TODO(synk): if callers can supply bf16 observations directly, skip this
    #             extra materialization (minor: input is a small fraction of
    #             HBM traffic).
    x_p = jnp.zeros((b_pad, IN_PAD), COMPUTE_DTYPE).at[:B, :in_size].set(
        x.astype(COMPUTE_DTYPE))

    grid = (b_pad // tb,)

    def resident(shape):
        # Full-array block pinned to block (0, 0): stays VMEM-resident across
        # all batch-grid iterations (total < 40 KiB, never re-DMA'd).
        return pl.BlockSpec(shape, lambda i: (0,) * len(shape))

    out = pl.pallas_call(
        dqn_kernel,
        out_shape=jax.ShapeDtypeStruct((b_pad, out_store), jnp.float32),
        grid=grid,
        in_specs=[
            pl.BlockSpec((tb, IN_PAD), lambda i: (i, 0)),
            resident(w1.shape), resident(b1.shape),
            resident(w2.shape), resident(b2.shape),
            resident(w3.shape), resident(b3.shape),
        ],
        out_specs=pl.BlockSpec((tb, out_store), lambda i: (i, 0)),
        compiler_params=pltpu.CompilerParams(
            dimension_semantics=("parallel",)),   # megacore sharding on v7x
    )(x_p, w1, b1, w2, b2, w3, b3)

    return out[:B, :out_size]


def init_params(key, in_size, out_size):
    """Deterministic init mimicking nn.Linear's U(-1/sqrt(fan_in), +1/sqrt(fan_in)).
    Weights are stored as (in_features, out_features) = W.T relative to PyTorch."""
    dims = [(in_size, H1), (H1, H2), (H2, out_size)]
    params = {}
    for i, (fan_in, fan_out) in enumerate(dims, start=1):
        key, kw, kb = jax.random.split(key, 3)
        bound = 1.0 / (fan_in ** 0.5)
        params[f"w{i}"] = jax.random.uniform(
            kw, (fan_in, fan_out), jnp.float32, minval=-bound, maxval=bound)
        params[f"b{i}"] = jax.random.uniform(
            kb, (1, fan_out), jnp.float32, minval=-bound, maxval=bound)
    return params


def dqn_ref(x, p):
    """Pure-JAX reference matching the kernel's bf16-input / f32-accum numerics."""
    def lin(a, w, b):
        return jnp.dot(a.astype(COMPUTE_DTYPE), w.astype(COMPUTE_DTYPE),
                       preferred_element_type=jnp.float32) + b.astype(jnp.float32)
    h1 = jnp.maximum(lin(x, p["w1"], p["b1"]), 0.0)
    h2 = jnp.maximum(lin(h1, p["w2"], p["b2"]), 0.0)   # dropout: eval-mode identity
    h3 = jnp.maximum(lin(h2, p["w3"], p["b3"]), 0.0)
    return h3


if __name__ == "__main__":
    key = jax.random.PRNGKey(0)
    in_size, out_size, batch = 4, 2, 8   # CartPole: 4 observations, 2 actions

    key, kx = jax.random.split(key)
    x = jax.random.normal(kx, (batch, in_size), dtype=jnp.float32)
    params = init_params(key, in_size, out_size)

    out = jax.block_until_ready(dqn_forward(x, params))
    ref = dqn_ref(x, params)
    assert out.shape == (batch, out_size)
    assert jnp.allclose(out, ref, atol=1e-3, rtol=1e-3), \
        float(jnp.max(jnp.abs(out - ref)))

    # Multi-step grid + row-padding path (exercises >= 2 grid steps / megacore).
    key, kx2 = jax.random.split(key)
    x2 = jax.random.normal(kx2, (40, in_size), dtype=jnp.float32)
    out2 = jax.block_until_ready(dqn_forward(x2, params, block_b=64))
    ref2 = dqn_ref(x2, params)
    assert out2.shape == (40, out_size)
    assert jnp.allclose(out2, ref2, atol=1e-3, rtol=1e-3), \
        float(jnp.max(jnp.abs(out2 - ref2)))

    print("KERNEL_OK")
</pallas_src>

<mosaic_0001>
module attributes {stable_mosaic.version = 11 : i64} {
  func.func @dqn_kernel(%arg0: i32, %arg1: memref<8x8xbf16, #tpu.memory_space<vmem>>, %arg2: memref<8x128xbf16, #tpu.memory_space<vmem>>, %arg3: memref<1x128xf32, #tpu.memory_space<vmem>>, %arg4: memref<128x64xbf16, #tpu.memory_space<vmem>>, %arg5: memref<1x64xf32, #tpu.memory_space<vmem>>, %arg6: memref<64x128xbf16, #tpu.memory_space<vmem>>, %arg7: memref<1x128xf32, #tpu.memory_space<vmem>>, %arg8: memref<8x8xf32, #tpu.memory_space<vmem>>) attributes {dimension_semantics = [#tpu.dimension_semantics<parallel>], iteration_bounds = array<i64: 1>, scalar_prefetch = 0 : i64, scratch_operands = 0 : i64, tpu.core_type = #tpu.core_type<tc>, window_params = [{transform_indices = @transform_0, window_bounds = array<i64: 8, 8>}, {pipeline_mode = #tpu.pipeline_mode<synchronous>, transform_indices = @transform_1, window_bounds = array<i64: 8, 128>}, {pipeline_mode = #tpu.pipeline_mode<synchronous>, transform_indices = @transform_2, window_bounds = array<i64: 1, 128>}, {pipeline_mode = #tpu.pipeline_mode<synchronous>, transform_indices = @transform_3, window_bounds = array<i64: 128, 64>}, {pipeline_mode = #tpu.pipeline_mode<synchronous>, transform_indices = @transform_4, window_bounds = array<i64: 1, 64>}, {pipeline_mode = #tpu.pipeline_mode<synchronous>, transform_indices = @transform_5, window_bounds = array<i64: 64, 128>}, {pipeline_mode = #tpu.pipeline_mode<synchronous>, transform_indices = @transform_6, window_bounds = array<i64: 1, 128>}, {transform_indices = @transform_7, window_bounds = array<i64: 8, 8>}]} {
    %c0 = arith.constant 0 : index
    %c0_0 = arith.constant 0 : index
    %0 = vector.load %arg1[%c0, %c0_0] : memref<8x8xbf16, #tpu.memory_space<vmem>>, vector<8x8xbf16>
    %c0_1 = arith.constant 0 : index
    %c0_2 = arith.constant 0 : index
    %1 = vector.load %arg2[%c0_1, %c0_2] : memref<8x128xbf16, #tpu.memory_space<vmem>>, vector<8x128xbf16>
    %cst = arith.constant dense<0.000000e+00> : vector<8x128xf32>
    %2 = tpu.matmul %0, %1, %cst {dimension_numbers = #tpu.dot_dimension_numbers<[1], [0], [0], [1], [0, 0, 1, 1], [], []>} : vector<8x8xbf16>, vector<8x128xbf16>, vector<8x128xf32> -> vector<8x128xf32>
    %c0_3 = arith.constant 0 : index
    %c0_4 = arith.constant 0 : index
    %3 = vector.load %arg3[%c0_3, %c0_4] : memref<1x128xf32, #tpu.memory_space<vmem>>, vector<1x128xf32>
    %4 = vector.broadcast %3 : vector<1x128xf32> to vector<8x128xf32>
    %5 = arith.addf %2, %4 : vector<8x128xf32>
    %cst_5 = arith.constant 0.000000e+00 : f32
    %6 = vector.broadcast %cst_5 : f32 to vector<8x128xf32>
    %7 = arith.maximumf %5, %6 : vector<8x128xf32>
    %8 = arith.truncf %7 : vector<8x128xf32> to vector<8x128xbf16>
    %c0_6 = arith.constant 0 : index
    %c0_7 = arith.constant 0 : index
    %9 = vector.load %arg4[%c0_6, %c0_7] : memref<128x64xbf16, #tpu.memory_space<vmem>>, vector<128x64xbf16>
    %cst_8 = arith.constant dense<0.000000e+00> : vector<8x64xf32>
    %10 = tpu.matmul %8, %9, %cst_8 {dimension_numbers = #tpu.dot_dimension_numbers<[1], [0], [0], [1], [0, 0, 1, 1], [], []>} : vector<8x128xbf16>, vector<128x64xbf16>, vector<8x64xf32> -> vector<8x64xf32>
    %c0_9 = arith.constant 0 : index
    %c0_10 = arith.constant 0 : index
    %11 = vector.load %arg5[%c0_9, %c0_10] : memref<1x64xf32, #tpu.memory_space<vmem>>, vector<1x64xf32>
    %12 = vector.broadcast %11 : vector<1x64xf32> to vector<8x64xf32>
    %13 = arith.addf %10, %12 : vector<8x64xf32>
    %cst_11 = arith.constant 0.000000e+00 : f32
    %14 = vector.broadcast %cst_11 : f32 to vector<8x64xf32>
    %15 = arith.maximumf %13, %14 : vector<8x64xf32>
    %16 = arith.truncf %15 : vector<8x64xf32> to vector<8x64xbf16>
    %c0_12 = arith.constant 0 : index
    %c0_13 = arith.constant 0 : index
    %17 = vector.load %arg6[%c0_12, %c0_13] : memref<64x128xbf16, #tpu.memory_space<vmem>>, vector<64x128xbf16>
    %cst_14 = arith.constant dense<0.000000e+00> : vector<8x128xf32>
    %18 = tpu.matmul %16, %17, %cst_14 {dimension_numbers = #tpu.dot_dimension_numbers<[1], [0], [0], [1], [0, 0, 1, 1], [], []>} : vector<8x64xbf16>, vector<64x128xbf16>, vector<8x128xf32> -> vector<8x128xf32>
    %c0_15 = arith.constant 0 : index
    %c0_16 = arith.constant 0 : index
    %19 = vector.load %arg7[%c0_15, %c0_16] : memref<1x128xf32, #tpu.memory_space<vmem>>, vector<1x128xf32>
    %20 = vector.broadcast %19 : vector<1x128xf32> to vector<8x128xf32>
    %21 = arith.addf %18, %20 : vector<8x128xf32>
    %cst_17 = arith.constant 0.000000e+00 : f32
    %22 = vector.broadcast %cst_17 : f32 to vector<8x128xf32>
    %23 = arith.maximumf %21, %22 : vector<8x128xf32>
    %24 = vector.extract_strided_slice %23 {offsets = [0, 0], sizes = [8, 8], strides = [1, 1]} : vector<8x128xf32> to vector<8x8xf32>
    %c0_18 = arith.constant 0 : index
    %c0_19 = arith.constant 0 : index
    %25 = vector.load %arg8[%c0_18, %c0_19] : memref<8x8xf32, #tpu.memory_space<vmem>>, vector<8x8xf32>
    tpu.vector_store %arg8[%c0_18, %c0_19], %24 {strides = array<i32>} : memref<8x8xf32, #tpu.memory_space<vmem>>, vector<8x8xf32>,
    return
  }
  func.func @transform_0(%arg0: i32) -> (i32, i32) {
    %c0_i32 = arith.constant 0 : i32
    %c0_i32_0 = arith.constant 0 : i32
    return %arg0, %c0_i32 : i32, i32
  }
  func.func @transform_1(%arg0: i32) -> (i32, i32) {
    %c0_i32 = arith.constant 0 : i32
    %c0_i32_0 = arith.constant 0 : i32
    %c0_i32_1 = arith.constant 0 : i32
    return %c0_i32, %c0_i32_0 : i32, i32
  }
  func.func @transform_2(%arg0: i32) -> (i32, i32) {
    %c0_i32 = arith.constant 0 : i32
    %c0_i32_0 = arith.constant 0 : i32
    %c0_i32_1 = arith.constant 0 : i32
    return %c0_i32, %c0_i32_0 : i32, i32
  }
  func.func @transform_3(%arg0: i32) -> (i32, i32) {
    %c0_i32 = arith.constant 0 : i32
    %c0_i32_0 = arith.constant 0 : i32
    %c0_i32_1 = arith.constant 0 : i32
    return %c0_i32, %c0_i32_0 : i32, i32
  }
  func.func @transform_4(%arg0: i32) -> (i32, i32) {
    %c0_i32 = arith.constant 0 : i32
    %c0_i32_0 = arith.constant 0 : i32
    %c0_i32_1 = arith.constant 0 : i32
    return %c0_i32, %c0_i32_0 : i32, i32
  }
  func.func @transform_5(%arg0: i32) -> (i32, i32) {
    %c0_i32 = arith.constant 0 : i32
    %c0_i32_0 = arith.constant 0 : i32
    %c0_i32_1 = arith.constant 0 : i32
    return %c0_i32, %c0_i32_0 : i32, i32
  }
  func.func @transform_6(%arg0: i32) -> (i32, i32) {
    %c0_i32 = arith.constant 0 : i32
    %c0_i32_0 = arith.constant 0 : i32
    %c0_i32_1 = arith.constant 0 : i32
    return %c0_i32, %c0_i32_0 : i32, i32
  }
  func.func @transform_7(%arg0: i32) -> (i32, i32) {
    %c0_i32 = arith.constant 0 : i32
    %c0_i32_0 = arith.constant 0 : i32
    return %arg0, %c0_i32 : i32, i32
  }
}

</mosaic_0001>

<llo_original>
// kernel: tpu_custom_call.1
$region0: #{tpu_custom_call.1}
  #allocation0 [shape = 'u32[]', space=smem, size = 0x4, offset = 0x4, fixed_abs, tag = 'smem constant byte address 0x4 - core index']
  #allocation1 [shape = 'u32[144,128]{1,0:T(1,128)}', space=vmem, size = 0x12000, scoped, tag = 'internal scratch']
  %s0 = inlined_call_operand.vmem [shape: bf16[8,8], index: 0, kind: input, shape index: {}]
  %s1 = inlined_call_operand.vmem [shape: bf16[8,128], index: 1, kind: input, shape index: {}]
  %s2 = inlined_call_operand.vmem [shape: f32[1,128], index: 2, kind: input, shape index: {}]
  %s3 = inlined_call_operand.vmem [shape: bf16[128,64], index: 3, kind: input, shape index: {}]
  %s4 = inlined_call_operand.vmem [shape: f32[1,64], index: 4, kind: input, shape index: {}]
  %s5 = inlined_call_operand.vmem [shape: bf16[64,128], index: 5, kind: input, shape index: {}]
  %s6 = inlined_call_operand.vmem [shape: f32[1,128], index: 6, kind: input, shape index: {}]
  %s7 = inlined_call_operand.hbm [shape: f32[8,8], index: 7, kind: output, shape index: {}]
  %s8 = sld [smem:[#allocation0]]
  $region38: #{tpu_custom_call.1} parent=0
    _
  %s10 = ssub.s32 1, %s8
  %s11 = scalar_select 0, %s10, %s8
  $region1: #{tpu_custom_call.1} parent=0
    #allocation2 [shape = 'u8[4096]{0}', space=vmem, size = 0x1000, scoped, tag = 'output window, operand 0, single buffered']
    #allocation3 [shape = 's32[1]{0}', space=sflag, size = 0x4, scoped, tag = 'scoped memory for tpu_custom_call.1']
    %12 = vsyncpa [#allocation3], 0
    // Predicated region
    $region2: #{tpu_custom_call.1} parent=1 // pred_check
      _
    $region3: #{tpu_custom_call.1} parent=1 // pred_check_branch
      %14 = sbr.rel (0) target = $region5
    $region4: #{tpu_custom_call.1} parent=1 // pred_region
      _
    $region5: #{tpu_custom_call.1} parent=1 // pred_fallthru
      _
    // Predicated region
    $region6: #{tpu_custom_call.1} parent=1 // pred_check
      _
    $region7: #{tpu_custom_call.1} parent=1 // pred_check_branch
      %16 = sbr.rel (0) target = $region9
    $region8: #{tpu_custom_call.1} parent=1 // pred_region
      _
    $region9: #{tpu_custom_call.1} parent=1 // pred_fallthru
      _
    // Predicated region
    $region10: #{tpu_custom_call.1} parent=1 // pred_check
      _
    $region11: #{tpu_custom_call.1} parent=1 // pred_check_branch
      %18 = sbr.rel (0) target = $region13
    $region12: #{tpu_custom_call.1} parent=1 // pred_region
      _
    $region13: #{tpu_custom_call.1} parent=1 // pred_fallthru
      _
    // Predicated region
    $region14: #{tpu_custom_call.1} parent=1 // pred_check
      _
    $region15: #{tpu_custom_call.1} parent=1 // pred_check_branch
      %20 = sbr.rel (0) target = $region17
    $region16: #{tpu_custom_call.1} parent=1 // pred_region
      _
    $region17: #{tpu_custom_call.1} parent=1 // pred_fallthru
      _
    // Predicated region
    $region18: #{tpu_custom_call.1} parent=1 // pred_check
      _
    $region19: #{tpu_custom_call.1} parent=1 // pred_check_branch
      %22 = sbr.rel (0) target = $region21
    $region20: #{tpu_custom_call.1} parent=1 // pred_region
      _
    $region21: #{tpu_custom_call.1} parent=1 // pred_fallthru
      _
    // Predicated region
    $region22: #{tpu_custom_call.1} parent=1 // pred_check
      _
    $region23: #{tpu_custom_call.1} parent=1 // pred_check_branch
      %24 = sbr.rel (0) target = $region25
    $region24: #{tpu_custom_call.1} parent=1 // pred_region
      _
    $region25: #{tpu_custom_call.1} parent=1 // pred_fallthru
      _
    // Predicated region
    $region26: #{tpu_custom_call.1} parent=1 // pred_check
      _
    $region27: #{tpu_custom_call.1} parent=1 // pred_check_branch
      %26 = sbr.rel (0) target = $region29
    $region28: #{tpu_custom_call.1} parent=1 // pred_region
      _
    $region29: #{tpu_custom_call.1} parent=1 // pred_fallthru
      _
    %v28 = vld [vmem:[%s0] sm:$0xf]
    %v29 = vld [vmem:[%s1] sm:$0xf]
    %v30 = vld [vmem:[%s2] sm:$0x1]
    %v32 = vlaneseq
    %v33 = vshrl.u32 %v32, 7
    %v34 = vsub.s32 0, %v33
    %v35 = vrot.slane %v30, %v34
    %vm37 = vcmask 64512
    %v39 = vsel %vm37, %v28, 0
    %vm41 = vcmask 1043456
    %v43 = vsel %vm41, %v29, 0
    %45 = vmatprep.subr.bf16.mxu0 0
    %46 = vmatpush1.bf16.msra.mxu0 %v43
    %47 = vmatprep.subr.bf16.mxu0 0
    %48 = vmatpush1.bf16.msra.mxu0 0
    %49 = vmatprep.subr.bf16.mxu0 0
    %50 = vmatpush1.bf16.msra.mxu0 0
    %51 = vmatprep.subr.bf16.mxu0 0
    %52 = vmatpush1.bf16.msra.mxu0 0
    %53 = vmatprep.subr.bf16.mxu0 0
    %54 = vmatpush1.bf16.msra.mxu0 0
    %55 = vmatprep.subr.bf16.mxu0 0
    %56 = vmatpush1.bf16.msra.mxu0 0
    %57 = vmatprep.subr.bf16.mxu0 0
    %58 = vmatpush1.bf16.msra.mxu0 0
    %59 = vmatprep.subr.bf16.mxu0 0
    %60 = vmatpush1.bf16.msra.mxu0 0
    %61 = vmatprep.subr.bf16.mxu0 0
    %62 = vmatpush1.bf16.msra.mxu0 0
    %63 = vmatprep.subr.bf16.mxu0 0
    %64 = vmatpush1.bf16.msra.mxu0 0
    %65 = vmatprep.subr.bf16.mxu0 0
    %66 = vmatpush1.bf16.msra.mxu0 0
    %67 = vmatprep.subr.bf16.mxu0 0
    %68 = vmatpush1.bf16.msra.mxu0 0
    %69 = vmatprep.subr.bf16.mxu0 0
    %70 = vmatpush1.bf16.msra.mxu0 0
    %71 = vmatprep.subr.bf16.mxu0 0
    %72 = vmatpush1.bf16.msra.mxu0 0
    %73 = vmatprep.subr.bf16.mxu0 0
    %74 = vmatpush1.bf16.msra.mxu0 0
    %75 = vmatprep.subr.bf16.mxu0 0
    %76 = vmatpush1.bf16.msra.mxu0 0
    %77 = vmatprep.mubr.bf16.mxu0 0
    %78 = vmatmul.mubr.bf16.gmra.mrb[0].mxu0 %v39
    %v79 = vpop.f32.mrb[0].mxu0
    %v80 = vadd.f32 %v35, %v79
    %v81 = vpop.f32.mrb[0].mxu0
    %v82 = vpop.f32.mrb[0].mxu0
    %v83 = vpop.f32.mrb[0].mxu0
    %84 = vdwg.mxu0
    %v85 = vmax.f32 %v80, 0.0
    %v86 = vpack.c.bf16 %v85, %v85
    %v87 = vld [vmem:[%s3] sm:$0xf]
    %v88 = vld [vmem:[%s3 + $0x4] sm:$0xf]
    %v89 = vld [vmem:[%s3 + $0x8] sm:$0xf]
    %v90 = vld [vmem:[%s3 + $0xc] sm:$0xf]
    %v91 = vld [vmem:[%s3 + $0x10] sm:$0xf]
    %v92 = vld [vmem:[%s3 + $0x14] sm:$0xf]
    %v93 = vld [vmem:[%s3 + $0x18] sm:$0xf]
    %v94 = vld [vmem:[%s3 + $0x1c] sm:$0xf]
    %v95 = vld [vmem:[%s3 + $0x20] sm:$0xf]
    %v96 = vld [vmem:[%s3 + $0x24] sm:$0xf]
    %v97 = vld [vmem:[%s3 + $0x28] sm:$0xf]
    %v98 = vld [vmem:[%s3 + $0x2c] sm:$0xf]
    %v99 = vld [vmem:[%s3 + $0x30] sm:$0xf]
    %v100 = vld [vmem:[%s3 + $0x34] sm:$0xf]
    %v101 = vld [vmem:[%s3 + $0x38] sm:$0xf]
    %v102 = vld [vmem:[%s3 + $0x3c] sm:$0xf]
    %v103 = vld [vmem:[%s4] sm:$0x1]
    %v105 = vlaneseq
    %v106 = vshrl.u32 %v105, 7
    %v107 = vsub.s32 0, %v106
    %v108 = vrot.slane %v103, %v107
    %v126 = vunpack.c.l.b16 %v87
    %v127 = vunpack.c.l.b16 %v88
    %v128 = vunpack.c.l.b16 %v89
    %v129 = vunpack.c.l.b16 %v90
    %v130 = vunpack.c.l.b16 %v91
    %v131 = vunpack.c.l.b16 %v92
    %v132 = vunpack.c.l.b16 %v93
    %v133 = vunpack.c.l.b16 %v94
    %v134 = vunpack.c.l.b16 %v95
    %v135 = vunpack.c.l.b16 %v96
    %v136 = vunpack.c.l.b16 %v97
    %v137 = vunpack.c.l.b16 %v98
    %v138 = vunpack.c.l.b16 %v99
    %v139 = vunpack.c.l.b16 %v100
    %v140 = vunpack.c.l.b16 %v101
    %v141 = vunpack.c.l.b16 %v102
    %v142 = vpack.c.b16 %v127, %v126
    %v143 = vpack.c.b16 %v129, %v128
    %v144 = vpack.c.b16 %v131, %v130
    %v145 = vpack.c.b16 %v133, %v132
    %v146 = vpack.c.b16 %v135, %v134
    %v147 = vpack.c.b16 %v137, %v136
    %v148 = vpack.c.b16 %v139, %v138
    %v149 = vpack.c.b16 %v141, %v140
    %158 = vmatprep.subr.bf16.mxu0 0
    %159 = vmatpush1.bf16.msra.mxu0 %v142
    %160 = vmatprep.subr.bf16.mxu0 0
    %161 = vmatpush1.bf16.msra.mxu0 %v143
    %162 = vmatprep.subr.bf16.mxu0 0
    %163 = vmatpush1.bf16.msra.mxu0 %v144
    %164 = vmatprep.subr.bf16.mxu0 0
    %165 = vmatpush1.bf16.msra.mxu0 %v145
    %166 = vmatprep.subr.bf16.mxu0 0
    %167 = vmatpush1.bf16.msra.mxu0 %v146
    %168 = vmatprep.subr.bf16.mxu0 0
    %169 = vmatpush1.bf16.msra.mxu0 %v147
    %170 = vmatprep.subr.bf16.mxu0 0
    %171 = vmatpush1.bf16.msra.mxu0 %v148
    %172 = vmatprep.subr.bf16.mxu0 0
    %173 = vmatpush1.bf16.msra.mxu0 %v149
    %174 = vmatprep.subr.bf16.mxu0 0
    %175 = vmatpush1.bf16.msra.mxu0 0
    %176 = vmatprep.subr.bf16.mxu0 0
    %177 = vmatpush1.bf16.msra.mxu0 0
    %178 = vmatprep.subr.bf16.mxu0 0
    %179 = vmatpush1.bf16.msra.mxu0 0
    %180 = vmatprep.subr.bf16.mxu0 0
    %181 = vmatpush1.bf16.msra.mxu0 0
    %182 = vmatprep.subr.bf16.mxu0 0
    %183 = vmatpush1.bf16.msra.mxu0 0
    %184 = vmatprep.subr.bf16.mxu0 0
    %185 = vmatpush1.bf16.msra.mxu0 0
    %186 = vmatprep.subr.bf16.mxu0 0
    %187 = vmatpush1.bf16.msra.mxu0 0
    %188 = vmatprep.subr.bf16.mxu0 0
    %189 = vmatpush1.bf16.msra.mxu0 0
    %190 = vmatprep.mubr.bf16.mxu0 0
    %191 = vmatmul.mubr.bf16.gmra.mrb[0].mxu0 %v86
    %v192 = vpop.f32.mrb[0].mxu0
    %v193 = vadd.f32 %v108, %v192
    %v194 = vpop.f32.mrb[0].mxu0
    %v195 = vpop.f32.mrb[0].mxu0
    %v196 = vpop.f32.mrb[0].mxu0
    %197 = vdwg.mxu0
    %v198 = vmax.f32 %v193, 0.0
    %v199 = vpack.c.bf16 %v198, %v198
    %v200 = vld [vmem:[%s5] sm:$0xf]
    %v201 = vld [vmem:[%s5 + $0x4] sm:$0xf]
    %v202 = vld [vmem:[%s5 + $0x8] sm:$0xf]
    %v203 = vld [vmem:[%s5 + $0xc] sm:$0xf]
    %v204 = vld [vmem:[%s5 + $0x10] sm:$0xf]
    %v205 = vld [vmem:[%s5 + $0x14] sm:$0xf]
    %v206 = vld [vmem:[%s5 + $0x18] sm:$0xf]
    %v207 = vld [vmem:[%s5 + $0x1c] sm:$0xf]
    %v208 = vld [vmem:[%s6] sm:$0x1]
    %v210 = vlaneseq
    %v211 = vshrl.u32 %v210, 7
    %v212 = vsub.s32 0, %v211
    %v213 = vrot.slane %v208, %v212
    %v223 = vunpack.c.l.b16 %v200
    %v224 = vunpack.c.l.b16 %v201
    %v225 = vunpack.c.l.b16 %v202
    %v226 = vunpack.c.l.b16 %v203
    %v227 = vunpack.c.l.b16 %v204
    %v228 = vunpack.c.l.b16 %v205
    %v229 = vunpack.c.l.b16 %v206
    %v230 = vunpack.c.l.b16 %v207
    %v231 = vpack.c.b16 %v224, %v223
    %v232 = vpack.c.b16 %v226, %v225
    %v233 = vpack.c.b16 %v228, %v227
    %v234 = vpack.c.b16 %v230, %v229
    %vm239 = vcmask 523264
    %v241 = vsel %vm239, %v199, 0
    %243 = vmatprep.subr.bf16.mxu0 0
    %244 = vmatpush1.bf16.msra.mxu0 %v231
    %245 = vmatprep.subr.bf16.mxu0 0
    %246 = vmatpush1.bf16.msra.mxu0 %v232
    %247 = vmatprep.subr.bf16.mxu0 0
    %248 = vmatpush1.bf16.msra.mxu0 %v233
    %249 = vmatprep.subr.bf16.mxu0 0
    %250 = vmatpush1.bf16.msra.mxu0 %v234
    %251 = vmatprep.subr.bf16.mxu0 0
    %252 = vmatpush1.bf16.msra.mxu0 0
    %253 = vmatprep.subr.bf16.mxu0 0
    %254 = vmatpush1.bf16.msra.mxu0 0
    %255 = vmatprep.subr.bf16.mxu0 0
    %256 = vmatpush1.bf16.msra.mxu0 0
    %257 = vmatprep.subr.bf16.mxu0 0
    %258 = vmatpush1.bf16.msra.mxu0 0
    %259 = vmatprep.subr.bf16.mxu0 0
    %260 = vmatpush1.bf16.msra.mxu0 0
    %261 = vmatprep.subr.bf16.mxu0 0
    %262 = vmatpush1.bf16.msra.mxu0 0
    %263 = vmatprep.subr.bf16.mxu0 0
    %264 = vmatpush1.bf16.msra.mxu0 0
    %265 = vmatprep.subr.bf16.mxu0 0
    %266 = vmatpush1.bf16.msra.mxu0 0
    %267 = vmatprep.subr.bf16.mxu0 0
    %268 = vmatpush1.bf16.msra.mxu0 0
    %269 = vmatprep.subr.bf16.mxu0 0
    %270 = vmatpush1.bf16.msra.mxu0 0
    %271 = vmatprep.subr.bf16.mxu0 0
    %272 = vmatpush1.bf16.msra.mxu0 0
    %273 = vmatprep.subr.bf16.mxu0 0
    %274 = vmatpush1.bf16.msra.mxu0 0
    %275 = vmatprep.mubr.bf16.mxu0 0
    %276 = vmatmul.mubr.bf16.gmra.mrb[0].mxu0 %v241
    %v277 = vpop.f32.mrb[0].mxu0
    %v278 = vadd.f32 %v213, %v277
    %v279 = vpop.f32.mrb[0].mxu0
    %v280 = vpop.f32.mrb[0].mxu0
    %v281 = vpop.f32.mrb[0].mxu0
    %282 = vdwg.mxu0
    %v283 = vmax.f32 %v278, 0.0
    %284 = vst.msk [vmem:[#allocation2] sm:$0xff] %vm37, %v283
    // Predicated region
    $region30: #{tpu_custom_call.1} parent=1 // pred_check
      _
    $region31: #{tpu_custom_call.1} parent=1 // pred_check_branch
      %286 = sbr.rel (0) target = $region33
    $region32: #{tpu_custom_call.1} parent=1 // pred_region
      %s288 = ssub.s32 128, 128
      %289 = vsyncadd [#allocation3], %s288
      %s291 = sshll.u32 [#allocation2], 4
      %s292 = int_to_ptr.vmem [resolvable:$true] %s291
      %294 = dma.vmem_to_hbm [thread:$0]  %s292, 128, %s7, [#allocation3]
    $region33: #{tpu_custom_call.1} parent=1 // pred_fallthru
      _
    // Predicated region
    $region34: #{tpu_custom_call.1} parent=1 // pred_check
      _
    $region35: #{tpu_custom_call.1} parent=1 // pred_check_branch
      %296 = sbr.rel (0) target = $region37
    $region36: #{tpu_custom_call.1} parent=1 // pred_region
      %297 = dma.done [#allocation3], 128
    $region37: #{tpu_custom_call.1} parent=1 // pred_fallthru
      _
    %298 = vsyncpa [#allocation3], 1

</llo_original>
